<compile_context>
chip_gen: v7x
topology: tpu7x:2x2x1
jax: 0.10.0
libtpu: 0.0.40
codegen_flags: <defaults>
</compile_context>

<pallas_src>
import jax
import jax.numpy as jnp
from jax.experimental import pallas as pl
from jax.experimental.pallas import tpu as pltpu


def _mobn_kernel(shift_ref, x_ref, o_ref):
    # shift_ref: (C,) float32 in SMEM (full array, scalar-indexed)
    # x_ref / o_ref: (1, 1, TS, LANE) tile in VMEM
    c = pl.program_id(1)
    o_ref[...] = (x_ref[...] + shift_ref[c]).astype(o_ref.dtype)


def mean_only_batchnorm(x_ncdhw, bias, momentum=0.1, running_mean=None):
    """Training-mode forward of MeanOnlyBatchNorm.

    x_ncdhw: (N, C, D, H, W)
    bias:    (C,)
    Returns (output (N, C, D, H, W), new_running_mean (C,)).
    """
    N, C, D, H, W = x_ncdhw.shape
    DHW = D * H * W

    # Lane-dense layout: prefer a 128-wide last dim (free contiguous reshape
    # of the D*H*W block).  Fallback keeps W as the (full-extent) last dim.
    LANE = 128 if DHW % 128 == 0 else W
    S = DHW // LANE
    x4 = x_ncdhw.reshape(N, C, S, LANE)

    # Single per-channel mean, computed once and reused for both the kernel
    # shift and the running_mean update (no duplicated HBM read of x).
    avg = jnp.mean(x_ncdhw.astype(jnp.float32), axis=(0, 2, 3, 4))
    # Fold (x - avg + bias) into a single add: x + shift, shift = bias - avg.
    shift = bias.astype(jnp.float32) - avg

    # Spatial tiling: keep blocks <= ~512 sublane rows x LANE lanes so
    # double-buffered in+out blocks stay well under v5e/v7x VMEM budgets,
    # while giving a fine-grained parallel grid for megacore sharding.
    TS = S
    if S > 512:
        for cand in (512, 256, 128, 64, 32, 16, 8):
            if S % cand == 0:
                TS = cand
                break
    n_sp = S // TS

    out4 = pl.pallas_call(
        _mobn_kernel,
        out_shape=jax.ShapeDtypeStruct((N, C, S, LANE), x4.dtype),
        grid=(N, C, n_sp),
        in_specs=[
            pl.BlockSpec(memory_space=pltpu.MemorySpace.SMEM),      # shift (C,)
            pl.BlockSpec((1, 1, TS, LANE), lambda n, c, s: (n, c, s, 0)),
        ],
        out_specs=pl.BlockSpec((1, 1, TS, LANE), lambda n, c, s: (n, c, s, 0)),
        compiler_params=pltpu.CompilerParams(
            dimension_semantics=("parallel", "parallel", "parallel")),
    )(shift, x4)

    out = out4.reshape(N, C, D, H, W)

    # running_mean buffer update (module side-effect), same avg as the kernel.
    if running_mean is None:
        running_mean = jnp.zeros((C,), dtype=jnp.float32)
    new_running_mean = (1.0 - momentum) * running_mean + momentum * avg

    return out, new_running_mean


if __name__ == "__main__":
    key = jax.random.PRNGKey(0)
    N, C, D, H, W = 2, 4, 8, 16, 16

    kx, kb = jax.random.split(key)
    x = jax.random.normal(kx, (N, C, D, H, W), dtype=jnp.float32)
    # Module initializes bias to zeros; use small nonzero values so the bias
    # path is actually exercised.
    bias = 0.01 * jnp.arange(C, dtype=jnp.float32)

    out, run_mean = mean_only_batchnorm(x, bias)
    out = jax.block_until_ready(out)
    run_mean = jax.block_until_ready(run_mean)

    # Pure-JAX reference (training-mode PyTorch semantics).
    avg = jnp.mean(x, axis=(0, 2, 3, 4))
    ref = x - avg.reshape(1, C, 1, 1, 1) + bias.reshape(1, C, 1, 1, 1)
    ref_rm = 0.1 * avg

    assert out.shape == x.shape and out.dtype == x.dtype
    assert jnp.max(jnp.abs(out - ref)) < 1e-5
    assert jnp.max(jnp.abs(run_mean - ref_rm)) < 1e-6

    print("KERNEL_OK")
</pallas_src>

<mosaic_0001>
module attributes {stable_mosaic.version = 11 : i64} {
  func.func @_mobn_kernel(%arg0: i32, %arg1: i32, %arg2: i32, %arg3: memref<4xf32, #tpu.memory_space<smem>>, %arg4: memref<1x1x16x128xf32, #tpu.memory_space<vmem>>, %arg5: memref<1x1x16x128xf32, #tpu.memory_space<vmem>>) attributes {dimension_semantics = [#tpu.dimension_semantics<parallel>, #tpu.dimension_semantics<parallel>, #tpu.dimension_semantics<parallel>], iteration_bounds = array<i64: 2, 4, 1>, scalar_prefetch = 0 : i64, scratch_operands = 0 : i64, tpu.core_type = #tpu.core_type<tc>, window_params = [{transform_indices = @transform_0, window_bounds = array<i64: 4>}, {transform_indices = @transform_1, window_bounds = array<i64: 1, 1, 16, 128>}, {transform_indices = @transform_2, window_bounds = array<i64: 1, 1, 16, 128>}]} {
    %c0 = arith.constant 0 : index
    %c0_0 = arith.constant 0 : index
    %c0_1 = arith.constant 0 : index
    %c0_2 = arith.constant 0 : index
    %0 = vector.load %arg4[%c0, %c0_0, %c0_1, %c0_2] : memref<1x1x16x128xf32, #tpu.memory_space<vmem>>, vector<1x1x16x128xf32>
    %1 = arith.index_cast %arg1 : i32 to index
    %2 = memref.load %arg3[%1] : memref<4xf32, #tpu.memory_space<smem>>
    %3 = vector.broadcast %2 : f32 to vector<1x1x16x128xf32>
    %4 = arith.addf %0, %3 : vector<1x1x16x128xf32>
    %c0_3 = arith.constant 0 : index
    %c0_4 = arith.constant 0 : index
    %c0_5 = arith.constant 0 : index
    %c0_6 = arith.constant 0 : index
    %5 = vector.load %arg5[%c0_3, %c0_4, %c0_5, %c0_6] : memref<1x1x16x128xf32, #tpu.memory_space<vmem>>, vector<1x1x16x128xf32>
    tpu.vector_store %arg5[%c0_3, %c0_4, %c0_5, %c0_6], %4 {strides = array<i32>} : memref<1x1x16x128xf32, #tpu.memory_space<vmem>>, vector<1x1x16x128xf32>,
    return
  }
  func.func @transform_0(%arg0: i32, %arg1: i32, %arg2: i32) -> i32 {
    %c0_i32 = arith.constant 0 : i32
    %c0_i32_0 = arith.constant 0 : i32
    return %c0_i32 : i32
  }
  func.func @transform_1(%arg0: i32, %arg1: i32, %arg2: i32) -> (i32, i32, i32, i32) {
    %c0_i32 = arith.constant 0 : i32
    %c0_i32_0 = arith.constant 0 : i32
    return %arg0, %arg1, %arg2, %c0_i32 : i32, i32, i32, i32
  }
  func.func @transform_2(%arg0: i32, %arg1: i32, %arg2: i32) -> (i32, i32, i32, i32) {
    %c0_i32 = arith.constant 0 : i32
    %c0_i32_0 = arith.constant 0 : i32
    return %arg0, %arg1, %arg2, %c0_i32 : i32, i32, i32, i32
  }
}

</mosaic_0001>

<llo_original>
// kernel: tpu_custom_call.1
$region0: #{tpu_custom_call.1}
  #allocation0 [shape = 'u32[]', space=smem, size = 0x4, offset = 0x4, fixed_abs, tag = 'smem constant byte address 0x4 - core index']
  #allocation1 [shape = 'u32[144,128]{1,0:T(1,128)}', space=vmem, size = 0x12000, scoped, tag = 'internal scratch']
  %s0 = inlined_call_operand.hbm [shape: f32[4], index: 0, kind: input, shape index: {}]
  %s1 = inlined_call_operand.hbm [shape: f32[2,4,16,128], index: 1, kind: input, shape index: {}]
  %s2 = inlined_call_operand.hbm [shape: f32[2,4,16,128], index: 2, kind: output, shape index: {}]
  %s3 = sld [smem:[#allocation0]]
  $region49: #{tpu_custom_call.1} parent=0
    _
  %s5 = ssub.s32 1, %s3
  %s6 = scalar_select 0, %s5, %s3
  $region1: #{tpu_custom_call.1} parent=0
    #allocation2 [shape = 'u8[512]{0}', space=smem, size = 0x200, scoped, tag = 'input window, operand 0, single buffered']
    #allocation3 [shape = 's32[2]{0}', space=sflag, size = 0x8, scoped, tag = 'scoped memory for tpu_custom_call.1']
    #allocation4 [shape = 's32[2]{0}', space=sflag, size = 0x8, scoped, tag = 'scoped memory for tpu_custom_call.1']
    #allocation5 [shape = 's32[2]{0}', space=sflag, size = 0x8, scoped, tag = 'scoped memory for tpu_custom_call.1']
    #allocation6 [shape = 'u8[16384]{0}', space=vmem, size = 0x4000, scoped, tag = 'input window, operand 1']
    #allocation7 [shape = 'u8[16384]{0}', space=vmem, size = 0x4000, scoped, tag = 'output window, operand 0']
    %7 = vsyncpa [#allocation5], 0
    %8 = vsyncpa [#allocation3], 0
    %s9 = scalar_lea.sflag [#allocation3], 1
    %10 = vsyncpa %s9, 0
    %11 = vsyncpa [#allocation4], 0
    %s12 = scalar_lea.sflag [#allocation4], 1
    %13 = vsyncpa %s12, 0
    loop: start=0, step=1, limit=10
    $region2: #{tpu_custom_call.1} parent=1 // loop_pre_header
      _
    $region3: #{tpu_custom_call.1} parent=1 // loop_header
      %s15 = sphi 0, %s19
      %p16 = scmp.ge.s32.totalorder %s15, 10
      %s22 = sphi 0, %s41
      %s23 = sphi 0, %s37
      %s24 = sphi 0, %s33
      %s25 = sphi 0, %s22
      %s26 = sphi 0, %s23
      %s27 = sphi 0, %s24
      %s28 = sphi 0, %s25
      %s29 = sphi 0, %s26
      %s30 = sphi 0, %s27
      %s42 = sphi 0, %s42
      %s44 = sphi 0, %s42
      %s45 = sphi 0, %s44
      %s59 = sphi 0, %s45
      %s69 = sphi 0, %s71
      %s72 = sphi 0, %s69
      %s73 = sphi 0, %s72
      %s89 = sphi 0, %s73
      %s99 = sphi 0, %s101
      %s102 = sphi 0, %s99
      %s103 = sphi 0, %s102
      %s119 = sphi 0, %s103
    $region4: #{tpu_custom_call.1} parent=1 // loop_header_branch
      %18 = sbr.rel (%p16) target = $region8
    $region5: #{tpu_custom_call.1} parent=1 // loop_body
      %s20 = ssub.s32 %s15, 1
      %s21 = ssub.s32 %s15, 2
      %s31 = sadd.s32 1, %s24
      %p32 = scmp.ge.s32.totalorder %s31, 1
      %s33 = scalar_select %p32, 0, %s31
      %s34 = sadd.s32 1, %s23
      %s35 = scalar_select %p32, %s34, %s23
      %p36 = scmp.ge.s32.totalorder %s35, 4
      %s37 = scalar_select %p36, 0, %s35
      %s38 = sadd.s32 1, %s22
      %s39 = scalar_select %p36, %s38, %s22
      %p40 = scmp.ge.s32.totalorder %s39, 2
      %s41 = scalar_select %p40, 0, %s39
      %s43 = sadd.s32 %s42, 1
      %p46 = scmp.eq.s32.totalorder %s15, 7
      %p47 = scmp.ne.s32.totalorder %s42, %s44
      %p48 = scmp.eq.s32.totalorder %s15, 0
      %p49 = por %p47, %p48
      %p50 = scmp.ne.s32.totalorder %s42, %s44
      %p51 = scmp.eq.s32.totalorder %s20, 7
      %p52 = por %p50, %p51
      %p53 = scmp.ne.s32.totalorder %s44, %s45
      %p54 = scmp.eq.s32.totalorder %s20, 0
      %p55 = por %p53, %p54
      %p56 = scmp.ne.s32.totalorder %s44, %s45
      %p57 = scmp.eq.s32.totalorder %s21, 7
      %p58 = por %p56, %p57
      %p60 = scmp.ne.s32.totalorder %s45, %s59
      %p61 = scmp.eq.s32.totalorder %s21, 0
      %p62 = por %p60, %p61
      %s63 = ssub.s32 %s22, %s41
      %s64 = ssub.s32 %s23, %s37
      %s65 = sor.u32 %s63, %s64
      %s66 = ssub.s32 %s24, %s33
      %s67 = sor.u32 %s65, %s66
      %p68 = scmp.eq.s32.totalorder %s67, 0
      %s70 = sadd.s32 %s69, 1
      %s71 = scalar_select %p68, %s69, %s70
      %p74 = pneg %p68
      %p75 = scmp.eq.s32.totalorder %s15, 7
      %p76 = por %p74, %p75
      %p77 = scmp.ne.s32.totalorder %s69, %s72
      %p78 = scmp.eq.s32.totalorder %s15, 0
      %p79 = por %p77, %p78
      %p80 = scmp.ne.s32.totalorder %s69, %s72
      %p81 = scmp.eq.s32.totalorder %s20, 7
      %p82 = por %p80, %p81
      %p83 = scmp.ne.s32.totalorder %s72, %s73
      %p84 = scmp.eq.s32.totalorder %s20, 0
      %p85 = por %p83, %p84
      %p86 = scmp.ne.s32.totalorder %s72, %s73
      %p87 = scmp.eq.s32.totalorder %s21, 7
      %p88 = por %p86, %p87
      %p90 = scmp.ne.s32.totalorder %s73, %s89
      %p91 = scmp.eq.s32.totalorder %s21, 0
      %p92 = por %p90, %p91
      %s93 = ssub.s32 %s22, %s41
      %s94 = ssub.s32 %s23, %s37
      %s95 = sor.u32 %s93, %s94
      %s96 = ssub.s32 %s24, %s33
      %s97 = sor.u32 %s95, %s96
      %p98 = scmp.eq.s32.totalorder %s97, 0
      %s100 = sadd.s32 %s99, 1
      %s101 = scalar_select %p98, %s99, %s100
      %p104 = pneg %p98
      %p105 = scmp.eq.s32.totalorder %s15, 7
      %p106 = por %p104, %p105
      %p107 = scmp.ne.s32.totalorder %s99, %s102
      %p108 = scmp.eq.s32.totalorder %s15, 0
      %p109 = por %p107, %p108
      %p110 = scmp.ne.s32.totalorder %s99, %s102
      %p111 = scmp.eq.s32.totalorder %s20, 7
      %p112 = por %p110, %p111
      %p113 = scmp.ne.s32.totalorder %s102, %s103
      %p114 = scmp.eq.s32.totalorder %s20, 0
      %p115 = por %p113, %p114
      %p116 = scmp.ne.s32.totalorder %s102, %s103
      %p117 = scmp.eq.s32.totalorder %s21, 7
      %p118 = por %p116, %p117
      %p120 = scmp.ne.s32.totalorder %s103, %s119
      %p121 = scmp.eq.s32.totalorder %s21, 0
      %p122 = por %p120, %p121
      %p123 = scmp.le.s32.totalorder 1, %s15
      %p124 = scmp.lt.s32.totalorder %s15, 9
      %p125 = pnand %p123, %p124
      %p126 = pneg %p125
      // Predicated region
      $region9: #{tpu_custom_call.1} parent=5 // pred_check
        _
      $region10: #{tpu_custom_call.1} parent=5 // pred_check_branch
        %128 = sbr.rel (%p125) target = $region12
      $region11: #{tpu_custom_call.1} parent=5 // pred_region
        %s129 = ssub.s32 %s15, 1
        // Predicated region
        $region13: #{tpu_custom_call.1} parent=11 // pred_check
          %p130 = pneg %p55
        $region14: #{tpu_custom_call.1} parent=11 // pred_check_branch
          %132 = sbr.rel (%p130) target = $region16
        $region15: #{tpu_custom_call.1} parent=11 // pred_region
          %s134 = ssub.s32 16, 16
          %135 = vsyncadd [#allocation5], %s134
          %138 = dma.hbm_to_smem %s0, 16, [#allocation2], [#allocation5]
        $region16: #{tpu_custom_call.1} parent=11 // pred_fallthru
          _
      $region12: #{tpu_custom_call.1} parent=5 // pred_fallthru
        _
      %p139 = scmp.lt.s32.totalorder %s15, 8
      // Predicated region
      $region17: #{tpu_custom_call.1} parent=5 // pred_check
        %p140 = pneg %p139
      $region18: #{tpu_custom_call.1} parent=5 // pred_check_branch
        %142 = sbr.rel (%p140) target = $region20
      $region19: #{tpu_custom_call.1} parent=5 // pred_region
        // Predicated region
        $region21: #{tpu_custom_call.1} parent=19 // pred_check
          %p143 = pneg %p79
        $region22: #{tpu_custom_call.1} parent=19 // pred_check_branch
          %145 = sbr.rel (%p143) target = $region24
        $region23: #{tpu_custom_call.1} parent=19 // pred_region
          %s146 = sand.u32 %s69, 1
          %s147 = scalar_lea.sflag [#allocation3], %s146
          %s148 = sand.u32 %s69, 1
          %s149 = smul.addr %s148, 16
          %s150 = scalar_lea.vmem [#allocation6], %s149
          %s151 = smul.u32 2, %s24
          %s153 = ssub.s32 256, 256
          %154 = vsyncadd %s147, %s153
          %s155 = smul.addr %s23, 2
          %s156 = sadd.s32 %s151, %s155
          %s157 = smul.addr %s22, 8
          %s158 = sadd.s32 %s156, %s157
          %s159 = smul.addr %s158, 128
          %s160 = scalar_lea.hbm %s1, %s159
          %s161 = sshll.u32 %s150, 4
          %s162 = int_to_ptr.vmem [resolvable:$true] %s161
          %167 = dma.hbm_to_vmem [thread:$0]  %s160, 256, %s162, %s147, 128, 128, 8
        $region24: #{tpu_custom_call.1} parent=19 // pred_fallthru
          _
      $region20: #{tpu_custom_call.1} parent=5 // pred_fallthru
        _
      %p168 = scmp.le.s32.totalorder 1, %s15
      %p169 = scmp.lt.s32.totalorder %s15, 9
      %p170 = pnand %p168, %p169
      %p171 = pneg %p170
      // Predicated region
      $region25: #{tpu_custom_call.1} parent=5 // pred_check
        _
      $region26: #{tpu_custom_call.1} parent=5 // pred_check_branch
        %173 = sbr.rel (%p170) target = $region28
      $region27: #{tpu_custom_call.1} parent=5 // pred_region
        %s174 = ssub.s32 %s15, 1
        // Predicated region
        $region29: #{tpu_custom_call.1} parent=27 // pred_check
          %p175 = pneg %p55
        $region30: #{tpu_custom_call.1} parent=27 // pred_check_branch
          %177 = sbr.rel (%p175) target = $region32
        $region31: #{tpu_custom_call.1} parent=27 // pred_region
          %178 = dma.done [#allocation5], 16
        $region32: #{tpu_custom_call.1} parent=27 // pred_fallthru
          _
        %s179 = sand.u32 %s72, 1
        %s180 = scalar_lea.sflag [#allocation3], %s179
        %s181 = sand.u32 %s72, 1
        %s182 = smul.addr %s181, 16
        %s183 = scalar_lea.vmem [#allocation6], %s182
        // Predicated region
        $region33: #{tpu_custom_call.1} parent=27 // pred_check
          %p184 = pneg %p85
        $region34: #{tpu_custom_call.1} parent=27 // pred_check_branch
          %186 = sbr.rel (%p184) target = $region36
        $region35: #{tpu_custom_call.1} parent=27 // pred_region
          %187 = dma.done %s180, 256
        $region36: #{tpu_custom_call.1} parent=27 // pred_fallthru
          _
        %188 = sfence
        %p189 = pneg %p55
        %p190 = pneg %p52
        %s191 = sand.u32 %s72, 1
        %s192 = scalar_lea.sflag [#allocation3], %s191
        %s193 = sand.u32 %s72, 1
        %s194 = smul.addr %s193, 16
        %s195 = scalar_lea.vmem [#allocation6], %s194
        %p196 = pneg %p85
        %p197 = pneg %p82
        %p198 = pneg %p115
        %p199 = pneg %p112
        %s200 = sand.u32 %s102, 1
        %s201 = scalar_lea.sflag [#allocation4], %s200
        %s202 = sand.u32 %s102, 1
        %s203 = smul.addr %s202, 16
        %s204 = scalar_lea.vmem [#allocation7], %s203
        %s205 = smul.u32 2, %s27
        %s206 = smul.u32 2, %s27
        %v207 = vld [vmem:[%s183] sm:$0xff]
        %v208 = vld [vmem:[%s183 + $0x8] sm:$0xff]
        %s209 = sld [smem:[#allocation2 + %s26]]
        %v210 = vstv %s209
        %v211 = vadd.f32 %v207, %v210
        %v212 = vadd.f32 %v208, %v210
        %213 = vst [vmem:[%s204] sm:$0xff] %v211
        %214 = vst [vmem:[%s204 + $0x8] sm:$0xff] %v212
        %s215 = sand.u32 %s102, 1
        %s216 = scalar_lea.sflag [#allocation4], %s215
        %s217 = sand.u32 %s102, 1
        %s218 = smul.addr %s217, 16
        %s219 = scalar_lea.vmem [#allocation7], %s218
        // Predicated region
        $region37: #{tpu_custom_call.1} parent=27 // pred_check
          %p220 = pneg %p112
        $region38: #{tpu_custom_call.1} parent=27 // pred_check_branch
          %222 = sbr.rel (%p220) target = $region40
        $region39: #{tpu_custom_call.1} parent=27 // pred_region
          %s223 = smul.u32 2, %s27
          %s225 = ssub.s32 256, 256
          %226 = vsyncadd %s216, %s225
          %s227 = smul.addr %s26, 2
          %s228 = sadd.s32 %s223, %s227
          %s229 = smul.addr %s25, 8
          %s230 = sadd.s32 %s228, %s229
          %s231 = smul.addr %s230, 128
          %s232 = scalar_lea.hbm %s2, %s231
          %s233 = sshll.u32 %s219, 4
          %s234 = int_to_ptr.vmem [resolvable:$true] %s233
          %239 = dma.vmem_to_hbm [thread:$0]  %s234, 256, %s232, %s216, 128, 128, 8
        $region40: #{tpu_custom_call.1} parent=27 // pred_fallthru
          _
      $region28: #{tpu_custom_call.1} parent=5 // pred_fallthru
        _
      %p240 = scmp.le.s32.totalorder 2, %s15
      // Predicated region
      $region41: #{tpu_custom_call.1} parent=5 // pred_check
        %p241 = pneg %p240
      $region42: #{tpu_custom_call.1} parent=5 // pred_check_branch
        %243 = sbr.rel (%p241) target = $region44
      $region43: #{tpu_custom_call.1} parent=5 // pred_region
        %s244 = ssub.s32 %s15, 2
        // Predicated region
        $region45: #{tpu_custom_call.1} parent=43 // pred_check
          %p245 = pneg %p118
        $region46: #{tpu_custom_call.1} parent=43 // pred_check_branch
          %247 = sbr.rel (%p245) target = $region48
        $region47: #{tpu_custom_call.1} parent=43 // pred_region
          %s248 = sand.u32 %s103, 1
          %s249 = scalar_lea.sflag [#allocation4], %s248
          %s250 = sand.u32 %s103, 1
          %s251 = smul.addr %s250, 16
          %s252 = scalar_lea.vmem [#allocation7], %s251
          %253 = dma.done %s249, 256
        $region48: #{tpu_custom_call.1} parent=43 // pred_fallthru
          _
      $region44: #{tpu_custom_call.1} parent=5 // pred_fallthru
        _
    $region6: #{tpu_custom_call.1} parent=1 // loop_footer
      %s19 = sadd.s32 1, %s15
    $region7: #{tpu_custom_call.1} parent=1 // loop_footer_branch
      %14 = sbr.rel target = $region3
    $region8: #{tpu_custom_call.1} parent=1 // loop_exit
      _
    %254 = vsyncpa [#allocation3], 1
    %s255 = scalar_lea.sflag [#allocation3], 1
    %256 = vsyncpa %s255, 1
    %257 = vsyncpa [#allocation4], 1
    %s258 = scalar_lea.sflag [#allocation4], 1
    %259 = vsyncpa %s258, 1
    %260 = vsyncpa [#allocation5], 1
    %s261 = scalar_lea.sflag [#allocation5], 1
    %262 = vsyncpa %s261, 1

</llo_original>
